<compile_context>
chip_gen: v7x
topology: tpu7x:2x2x1
jax: 0.10.0
libtpu: 0.0.40
codegen_flags: <defaults>
</compile_context>

<pallas_src>
import functools

import jax
import jax.numpy as jnp
from jax.experimental import pallas as pl
from jax.experimental.pallas import tpu as pltpu


# ---------------------------------------------------------------------------
# Kernel
# ---------------------------------------------------------------------------
def _fuse_ppnet_kernel(xd_ref, xp_ref, wd_ref, wp_ref, bias_ref,
                       wy_ref, s2_ref, out_ref, *, c8):
    cc = c8 * c8
    xd = xd_ref[...]                      # (TB, F)   bf16
    xp = xp_ref[...]                      # (TB, P)   bf16

    # One fused projection (replication selectors pre-folded into the weights):
    #   base = [g_rep | theta_rep | phi_rep | head]   -> (TB, 3*c8^2 + 8)  f32
    base = (jnp.dot(xd, wd_ref[...], preferred_element_type=jnp.float32)
            + jnp.dot(xp, wp_ref[...], preferred_element_type=jnp.float32)
            + bias_ref[...])

    g_rep     = base[:, 0 * cc:1 * cc]    # (TB, cc)  g_rep[b, i*c8+j]     = g[b, j]
    theta_rep = base[:, 1 * cc:2 * cc]    # (TB, cc)  theta_rep[b, i*c8+j] = theta[b, j]
    phi_rep   = base[:, 2 * cc:3 * cc]    # (TB, cc)  phi_rep[b, i*c8+j]   = phi[b, i]
    head      = base[:, 3 * cc:]          # (TB, 8)   fusion@W_head + all folded biases

    # --- softmax over j with an EXACT per-segment (per-i) max -----------------
    # max_j (phi_i * theta_j) == max(phi_i * max_j theta_j, phi_i * min_j theta_j)
    # -> purely elementwise + two cross-lane reductions, no extra matmul/rolls.
    tmax = jnp.max(theta_rep, axis=-1, keepdims=True)     # (TB, 1) = max_j theta
    tmin = jnp.min(theta_rep, axis=-1, keepdims=True)     # (TB, 1) = min_j theta
    seg_max = jnp.maximum(phi_rep * tmax, phi_rep * tmin)  # constant within each i-group
    ef = jnp.exp(phi_rep * theta_rep - seg_max)            # (TB, cc), max per segment == 1

    # --- merged segmented sums:  [ef | ef*g_rep] @ blockdiag(S, S) = [denom | numer]
    # (XLU alternative: roll+add tree over the 16-lane block; kept on MXU here.)
    lhs = jnp.concatenate([ef, ef * g_rep], axis=-1)        # (TB, 2*cc)
    sums = jnp.dot(lhs, s2_ref[...], preferred_element_type=jnp.float32)  # (TB, 2*c8)
    denom = sums[:, :c8]
    numer = sums[:, c8:]
    y = numer * pl.reciprocal(denom, approx=True)           # (TB, c8)

    # --- fused pose heads (residual + biases already folded into `head`) ------
    out_ref[...] = head + jnp.dot(y, wy_ref[...],
                                  preferred_element_type=jnp.float32)


# ---------------------------------------------------------------------------
# Weight folding (hoisted: call ONCE, reuse across forward calls)
# ---------------------------------------------------------------------------
def fold_params(p, pcd_out, compute_dtype=jnp.bfloat16):
    """Fold w_last / concat / replication selectors / residual / heads into
    4 kernel matrices + 1 bias row.  Pure parameter algebra, no activations."""
    P = pcd_out
    C = 2 * P
    C8 = C // 8
    CC = C8 * C8
    f32 = jnp.float32

    # fusion @ W + b == xd @ (w_last @ W[:P]) + xp @ W[P:] + (b + b_last @ W[:P])
    def through_fusion(W, b):
        return p["w_last"] @ W[:P], W[P:], b + p["b_last"] @ W[:P]

    # Replication selectors (constant 0/1); flat lane layout is i-major, j-minor.
    eye = jnp.eye(C8, dtype=f32)
    R = jnp.repeat(eye, C8, axis=1)      # row i -> cols i*C8 + j   (phi_rep)
    T = jnp.tile(eye, (1, C8))           # row j -> cols i*C8 + j   (g_rep / theta_rep)

    wd_g, wp_g, b_g = through_fusion(p["wg"], p["bg"])
    wd_t, wp_t, b_t = through_fusion(p["wt"], p["bt"])
    wd_f, wp_f, b_f = through_fusion(p["wp"], p["bp"])

    # Pose heads fused into one lane-dense 8-wide block: pos(3) | rot(4) | pad(1).
    w_head = jnp.concatenate([p["wpos"], p["wrot"], jnp.zeros((C, 1), f32)], axis=1)
    b_head = jnp.concatenate([p["bpos"], p["brot"], jnp.zeros((1, 1), f32)], axis=1)
    # out = y @ (ww @ w_head) + (b_head + bw @ w_head) + fusion @ w_head
    wd_h, wp_h, b_h = through_fusion(w_head, b_head + p["bw"] @ w_head)
    wy = p["ww"] @ w_head                                   # (C8, 8)

    # Fold the replication selectors straight into the projection so the kernel
    # never runs the tiny selector matmuls (output = [g_rep|theta_rep|phi_rep|head]).
    Wd = jnp.concatenate([wd_g @ T, wd_t @ T, wd_f @ R, wd_h], axis=1)   # (F, 3*CC+8)
    Wp = jnp.concatenate([wp_g @ T, wp_t @ T, wp_f @ R, wp_h], axis=1)   # (P, 3*CC+8)
    bias = jnp.concatenate([b_g @ T, b_t @ T, b_f @ R, b_h], axis=1)     # (1, 3*CC+8)

    # Merged segmented-sum matrix: [ef | ef*g_rep] @ blockdiag(S, S) = [denom | numer]
    S = R.T                                                  # (CC, C8): sum over j per i
    Z = jnp.zeros((CC, C8), f32)
    S2 = jnp.block([[S, Z], [Z, S]])                         # (2*CC, 2*C8)

    return {
        "Wd": Wd.astype(compute_dtype),     # bf16: halves the resident weight + LHS vregs
        "Wp": Wp.astype(compute_dtype),
        "bias": bias.astype(f32),           # added post-accumulation, keep f32
        "Wy": wy.astype(f32),
        "S2": S2.astype(f32),
    }


# ---------------------------------------------------------------------------
# Tiling
# ---------------------------------------------------------------------------
def _pick_batch_tile(B, itemsize=2):
    """Largest sublane-aligned batch tile that amortizes the ~0.35us/step grid
    overhead, keeps >=2 grid steps when B allows (v7x megacore), and stays within
    a conservative scoped-VMEM budget on v5e/v6e/v7x."""
    max_tile = 4096 if itemsize <= 2 else 2048   # bf16 vs f32 double-buffer budget
    if B <= 8:
        return B                                  # one full-extent block
    Bp = ((B + 7) // 8) * 8
    cands = [t for t in (4096, 2048, 1024, 512, 256, 128, 64, 32, 16)
             if t <= max_tile and 2 * t <= Bp]
    if not cands:
        return Bp                                 # small batch: single padded block
    def score(t):
        steps = (Bp + t - 1) // t
        return (steps * t, steps)                 # minimize padded rows, then steps
    return min(cands, key=score)


# ---------------------------------------------------------------------------
# Forward (takes pre-folded weights; jit-friendly)
# ---------------------------------------------------------------------------
def fuse_ppnet_forward(x_depth_feat, x_pcd_feat, folded):
    B, F = x_depth_feat.shape
    P = x_pcd_feat.shape[1]
    C8 = folded["Wy"].shape[0]
    CC = C8 * C8
    NW = folded["Wd"].shape[1]            # 3*CC + 8
    NH = folded["Wy"].shape[1]            # 8 (pos | rot | pad)

    cdt = folded["Wd"].dtype
    itemsize = jnp.dtype(cdt).itemsize
    # No-op if the producer already emits the compute dtype (recommended).
    xd = x_depth_feat.astype(cdt)
    xp = x_pcd_feat.astype(cdt)

    tb = _pick_batch_tile(B, itemsize)
    Bp = ((B + tb - 1) // tb) * tb
    if Bp != B:                           # ceil-grid via explicit zero padding
        xd = jnp.pad(xd, ((0, Bp - B), (0, 0)))
        xp = jnp.pad(xp, ((0, Bp - B), (0, 0)))
    grid = (Bp // tb,)

    def batch_spec(n):
        return pl.BlockSpec((tb, n), lambda i: (i, 0))

    def fixed_spec(a):                    # weights stay resident in VMEM
        return pl.BlockSpec(a.shape, lambda i: (0, 0))

    flops = 2 * Bp * ((F + P) * NW + (2 * CC) * (2 * C8) + C8 * NH) + 12 * Bp * CC
    bytes_accessed = (Bp * (F + P) * itemsize + Bp * NH * 4
                      + itemsize * (F + P) * NW
                      + 4 * (NW + C8 * NH + (2 * CC) * (2 * C8)))
    cost = pl.CostEstimate(flops=int(flops), transcendentals=int(Bp * CC),
                           bytes_accessed=int(bytes_accessed))

    out = pl.pallas_call(
        functools.partial(_fuse_ppnet_kernel, c8=C8),
        out_shape=jax.ShapeDtypeStruct((Bp, NH), jnp.float32),
        grid=grid,
        in_specs=[
            batch_spec(F),                # xd  (dominant HBM stream)
            batch_spec(P),                # xp
            fixed_spec(folded["Wd"]),
            fixed_spec(folded["Wp"]),
            fixed_spec(folded["bias"]),
            fixed_spec(folded["Wy"]),
            fixed_spec(folded["S2"]),
        ],
        out_specs=batch_spec(NH),
        compiler_params=pltpu.CompilerParams(
            dimension_semantics=("parallel",),
            vmem_limit_bytes=32 * 1024 * 1024),
        cost_estimate=cost,
    )(xd, xp, folded["Wd"], folded["Wp"], folded["bias"],
      folded["Wy"], folded["S2"])

    out = out[:B]
    return out[:, :3], out[:, 3:7]


# ---------------------------------------------------------------------------
# Parameter init (mirrors the PyTorch module) and pure-JAX reference
# ---------------------------------------------------------------------------
def init_params(key, feat_in=512, pcd_out=16):
    C = pcd_out * 2
    C8 = C // 8
    ks = jax.random.split(key, 8)
    f32 = jnp.float32

    def kaiming(k, fan_in, fan_out):
        return jax.random.normal(k, (fan_in, fan_out), f32) * jnp.sqrt(2.0 / fan_in)

    def default_linear(k, fan_in, fan_out):
        bound = 1.0 / jnp.sqrt(jnp.float32(fan_in))
        kw, kb = jax.random.split(k)
        w = jax.random.uniform(kw, (fan_in, fan_out), f32, -bound, bound)
        b = jax.random.uniform(kb, (1, fan_out), f32, -bound, bound)
        return w, b

    p = {}
    p["w_last"] = kaiming(ks[0], feat_in, pcd_out)
    p["b_last"] = jnp.zeros((1, pcd_out), f32)
    p["wg"], p["bg"] = default_linear(ks[1], C, C8)
    p["wt"], p["bt"] = default_linear(ks[2], C, C8)
    p["wp"], p["bp"] = default_linear(ks[3], C, C8)
    p["ww"], p["bw"] = default_linear(ks[4], C8, C)
    p["wpos"] = kaiming(ks[5], C, 3)
    p["bpos"] = jnp.zeros((1, 3), f32)
    p["wrot"] = kaiming(ks[6], C, 4)
    p["brot"] = jnp.zeros((1, 4), f32)
    return p


def reference_forward(x_depth_feat, x_pcd_feat, p):
    """Pure-JAX f32 reference mirroring the PyTorch forward (un-folded)."""
    depth = x_depth_feat @ p["w_last"] + p["b_last"]
    fusion = jnp.concatenate([depth, x_pcd_feat], axis=1)
    g = fusion @ p["wg"] + p["bg"]
    theta = fusion @ p["wt"] + p["bt"]
    phi = fusion @ p["wp"] + p["bp"]
    f = phi[:, :, None] * theta[:, None, :]
    f_div_c = jax.nn.softmax(f, axis=-1)
    y = jnp.sum(f_div_c * g[:, None, :], axis=-1)
    z = y @ p["ww"] + p["bw"] + fusion
    return z @ p["wpos"] + p["bpos"], z @ p["wrot"] + p["brot"]


if __name__ == "__main__":
    B = 2
    FEAT_IN = 512        # resnet34 fc.in_features
    PCD_OUT = 16         # cfg.output_dim

    key = jax.random.PRNGKey(0)
    k_params, k_xd, k_xp = jax.random.split(key, 3)

    params = init_params(k_params, feat_in=FEAT_IN, pcd_out=PCD_OUT)

    # Backbone feature vectors, emitted in bf16 at the producer (no extra HBM pass).
    x_depth_feat = jax.random.normal(k_xd, (B, FEAT_IN), jnp.float32).astype(jnp.bfloat16)
    x_pcd_feat = jax.random.normal(k_xp, (B, PCD_OUT), jnp.float32).astype(jnp.bfloat16)

    # Hoisted: fold the weights ONCE, reuse for every forward call.
    folded = fold_params(params, PCD_OUT, compute_dtype=jnp.bfloat16)
    fwd = jax.jit(fuse_ppnet_forward)

    pos, rot = fwd(x_depth_feat, x_pcd_feat, folded)
    pos = jax.block_until_ready(pos)
    rot = jax.block_until_ready(rot)

    # Reference consumes the same bf16-quantized features upcast to f32, so the only
    # remaining differences are folded-weight bf16 rounding, the (exact) folding's
    # summation-order change, and the approx reciprocal -> few-1e-3 level.
    pos_ref, rot_ref = reference_forward(x_depth_feat.astype(jnp.float32),
                                         x_pcd_feat.astype(jnp.float32), params)
    assert pos.shape == (B, 3) and rot.shape == (B, 4)
    assert bool(jnp.all(jnp.isfinite(pos))) and bool(jnp.all(jnp.isfinite(rot)))
    assert jnp.allclose(pos, pos_ref, atol=5e-2, rtol=5e-2), \
        float(jnp.max(jnp.abs(pos - pos_ref)))
    assert jnp.allclose(rot, rot_ref, atol=5e-2, rtol=5e-2), \
        float(jnp.max(jnp.abs(rot - rot_ref)))

    print("KERNEL_OK")
</pallas_src>

<mosaic_0001>
module attributes {stable_mosaic.version = 11 : i64} {
  func.func @_fuse_ppnet_kernel(%arg0: i32, %arg1: memref<2x512xbf16, #tpu.memory_space<vmem>>, %arg2: memref<2x16xbf16, #tpu.memory_space<vmem>>, %arg3: memref<512x56xbf16, #tpu.memory_space<vmem>>, %arg4: memref<16x56xbf16, #tpu.memory_space<vmem>>, %arg5: memref<1x56xf32, #tpu.memory_space<vmem>>, %arg6: memref<4x8xf32, #tpu.memory_space<vmem>>, %arg7: memref<32x8xf32, #tpu.memory_space<vmem>>, %arg8: memref<2x8xf32, #tpu.memory_space<vmem>>) attributes {dimension_semantics = [#tpu.dimension_semantics<parallel>], iteration_bounds = array<i64: 1>, scalar_prefetch = 0 : i64, scratch_operands = 0 : i64, tpu.core_type = #tpu.core_type<tc>, window_params = [{transform_indices = @transform_0, window_bounds = array<i64: 2, 512>}, {transform_indices = @transform_1, window_bounds = array<i64: 2, 16>}, {pipeline_mode = #tpu.pipeline_mode<synchronous>, transform_indices = @transform_2, window_bounds = array<i64: 512, 56>}, {pipeline_mode = #tpu.pipeline_mode<synchronous>, transform_indices = @transform_3, window_bounds = array<i64: 16, 56>}, {pipeline_mode = #tpu.pipeline_mode<synchronous>, transform_indices = @transform_4, window_bounds = array<i64: 1, 56>}, {pipeline_mode = #tpu.pipeline_mode<synchronous>, transform_indices = @transform_5, window_bounds = array<i64: 4, 8>}, {pipeline_mode = #tpu.pipeline_mode<synchronous>, transform_indices = @transform_6, window_bounds = array<i64: 32, 8>}, {transform_indices = @transform_7, window_bounds = array<i64: 2, 8>}]} {
    %c0 = arith.constant 0 : index
    %c0_0 = arith.constant 0 : index
    %0 = vector.load %arg1[%c0, %c0_0] : memref<2x512xbf16, #tpu.memory_space<vmem>>, vector<2x512xbf16>
    %c0_1 = arith.constant 0 : index
    %c0_2 = arith.constant 0 : index
    %1 = vector.load %arg2[%c0_1, %c0_2] : memref<2x16xbf16, #tpu.memory_space<vmem>>, vector<2x16xbf16>
    %c0_3 = arith.constant 0 : index
    %c0_4 = arith.constant 0 : index
    %2 = vector.load %arg3[%c0_3, %c0_4] : memref<512x56xbf16, #tpu.memory_space<vmem>>, vector<512x56xbf16>
    %cst = arith.constant dense<0.000000e+00> : vector<2x56xf32>
    %3 = tpu.matmul %0, %2, %cst {dimension_numbers = #tpu.dot_dimension_numbers<[1], [0], [0], [1], [0, 0, 1, 1], [], []>} : vector<2x512xbf16>, vector<512x56xbf16>, vector<2x56xf32> -> vector<2x56xf32>
    %c0_5 = arith.constant 0 : index
    %c0_6 = arith.constant 0 : index
    %4 = vector.load %arg4[%c0_5, %c0_6] : memref<16x56xbf16, #tpu.memory_space<vmem>>, vector<16x56xbf16>
    %cst_7 = arith.constant dense<0.000000e+00> : vector<2x56xf32>
    %5 = tpu.matmul %1, %4, %cst_7 {dimension_numbers = #tpu.dot_dimension_numbers<[1], [0], [0], [1], [0, 0, 1, 1], [], []>} : vector<2x16xbf16>, vector<16x56xbf16>, vector<2x56xf32> -> vector<2x56xf32>
    %6 = arith.addf %3, %5 : vector<2x56xf32>
    %c0_8 = arith.constant 0 : index
    %c0_9 = arith.constant 0 : index
    %7 = vector.load %arg5[%c0_8, %c0_9] : memref<1x56xf32, #tpu.memory_space<vmem>>, vector<1x56xf32>
    %8 = vector.broadcast %7 : vector<1x56xf32> to vector<2x56xf32>
    %9 = arith.addf %6, %8 : vector<2x56xf32>
    %10 = vector.extract_strided_slice %9 {offsets = [0, 0], sizes = [2, 16], strides = [1, 1]} : vector<2x56xf32> to vector<2x16xf32>
    %11 = vector.extract_strided_slice %9 {offsets = [0, 16], sizes = [2, 16], strides = [1, 1]} : vector<2x56xf32> to vector<2x16xf32>
    %12 = vector.extract_strided_slice %9 {offsets = [0, 32], sizes = [2, 16], strides = [1, 1]} : vector<2x56xf32> to vector<2x16xf32>
    %13 = vector.extract_strided_slice %9 {offsets = [0, 48], sizes = [2, 8], strides = [1, 1]} : vector<2x56xf32> to vector<2x8xf32>
    %cst_10 = arith.constant dense<0xFF800000> : vector<2xf32>
    %14 = vector.multi_reduction <maximumf>, %11, %cst_10 [1] : vector<2x16xf32> to vector<2xf32>
    %15 = vector.shape_cast %14 : vector<2xf32> to vector<2x1xf32>
    %cst_11 = arith.constant dense<0x7F800000> : vector<2xf32>
    %16 = vector.multi_reduction <minimumf>, %11, %cst_11 [1] : vector<2x16xf32> to vector<2xf32>
    %17 = vector.shape_cast %16 : vector<2xf32> to vector<2x1xf32>
    %18 = vector.broadcast %15 : vector<2x1xf32> to vector<2x16xf32>
    %19 = arith.mulf %12, %18 : vector<2x16xf32>
    %20 = vector.broadcast %17 : vector<2x1xf32> to vector<2x16xf32>
    %21 = arith.mulf %12, %20 : vector<2x16xf32>
    %22 = arith.maximumf %19, %21 : vector<2x16xf32>
    %23 = arith.mulf %12, %11 : vector<2x16xf32>
    %24 = arith.subf %23, %22 : vector<2x16xf32>
    %25 = math.exp %24 : vector<2x16xf32>
    %26 = arith.mulf %25, %10 : vector<2x16xf32>
    %27 = tpu.concatenate %25, %26 in 1 : vector<2x16xf32>, vector<2x16xf32> -> vector<2x32xf32>
    %c0_12 = arith.constant 0 : index
    %c0_13 = arith.constant 0 : index
    %28 = vector.load %arg7[%c0_12, %c0_13] : memref<32x8xf32, #tpu.memory_space<vmem>>, vector<32x8xf32>
    %cst_14 = arith.constant dense<0.000000e+00> : vector<2x8xf32>
    %29 = tpu.matmul %27, %28, %cst_14 {dimension_numbers = #tpu.dot_dimension_numbers<[1], [0], [0], [1], [0, 0, 1, 1], [], []>} : vector<2x32xf32>, vector<32x8xf32>, vector<2x8xf32> -> vector<2x8xf32>
    %30 = vector.extract_strided_slice %29 {offsets = [0, 0], sizes = [2, 4], strides = [1, 1]} : vector<2x8xf32> to vector<2x4xf32>
    %31 = vector.extract_strided_slice %29 {offsets = [0, 4], sizes = [2, 4], strides = [1, 1]} : vector<2x8xf32> to vector<2x4xf32>
    %32 = tpu.reciprocal %30 {approx = true} : vector<2x4xf32> -> vector<2x4xf32>
    %33 = arith.mulf %31, %32 : vector<2x4xf32>
    %c0_15 = arith.constant 0 : index
    %c0_16 = arith.constant 0 : index
    %34 = vector.load %arg6[%c0_15, %c0_16] : memref<4x8xf32, #tpu.memory_space<vmem>>, vector<4x8xf32>
    %cst_17 = arith.constant dense<0.000000e+00> : vector<2x8xf32>
    %35 = tpu.matmul %33, %34, %cst_17 {dimension_numbers = #tpu.dot_dimension_numbers<[1], [0], [0], [1], [0, 0, 1, 1], [], []>} : vector<2x4xf32>, vector<4x8xf32>, vector<2x8xf32> -> vector<2x8xf32>
    %36 = arith.addf %13, %35 : vector<2x8xf32>
    %c0_18 = arith.constant 0 : index
    %c0_19 = arith.constant 0 : index
    %37 = vector.load %arg8[%c0_18, %c0_19] : memref<2x8xf32, #tpu.memory_space<vmem>>, vector<2x8xf32>
    tpu.vector_store %arg8[%c0_18, %c0_19], %36 {strides = array<i32>} : memref<2x8xf32, #tpu.memory_space<vmem>>, vector<2x8xf32>,
    return
  }
  func.func @transform_0(%arg0: i32) -> (i32, i32) {
    %c0_i32 = arith.constant 0 : i32
    %c0_i32_0 = arith.constant 0 : i32
    return %arg0, %c0_i32 : i32, i32
  }
  func.func @transform_1(%arg0: i32) -> (i32, i32) {
    %c0_i32 = arith.constant 0 : i32
    %c0_i32_0 = arith.constant 0 : i32
    return %arg0, %c0_i32 : i32, i32
  }
  func.func @transform_2(%arg0: i32) -> (i32, i32) {
    %c0_i32 = arith.constant 0 : i32
    %c0_i32_0 = arith.constant 0 : i32
    %c0_i32_1 = arith.constant 0 : i32
    return %c0_i32, %c0_i32_0 : i32, i32
  }
  func.func @transform_3(%arg0: i32) -> (i32, i32) {
    %c0_i32 = arith.constant 0 : i32
    %c0_i32_0 = arith.constant 0 : i32
    %c0_i32_1 = arith.constant 0 : i32
    return %c0_i32, %c0_i32_0 : i32, i32
  }
  func.func @transform_4(%arg0: i32) -> (i32, i32) {
    %c0_i32 = arith.constant 0 : i32
    %c0_i32_0 = arith.constant 0 : i32
    %c0_i32_1 = arith.constant 0 : i32
    return %c0_i32, %c0_i32_0 : i32, i32
  }
  func.func @transform_5(%arg0: i32) -> (i32, i32) {
    %c0_i32 = arith.constant 0 : i32
    %c0_i32_0 = arith.constant 0 : i32
    %c0_i32_1 = arith.constant 0 : i32
    return %c0_i32, %c0_i32_0 : i32, i32
  }
  func.func @transform_6(%arg0: i32) -> (i32, i32) {
    %c0_i32 = arith.constant 0 : i32
    %c0_i32_0 = arith.constant 0 : i32
    %c0_i32_1 = arith.constant 0 : i32
    return %c0_i32, %c0_i32_0 : i32, i32
  }
  func.func @transform_7(%arg0: i32) -> (i32, i32) {
    %c0_i32 = arith.constant 0 : i32
    %c0_i32_0 = arith.constant 0 : i32
    return %arg0, %c0_i32 : i32, i32
  }
}

</mosaic_0001>

<llo_original>
// kernel: fuse_ppnet_forward.1
$region0: #{fuse_ppnet_forward.1}
  #allocation0 [shape = 'u32[]', space=smem, size = 0x4, offset = 0x4, fixed_abs, tag = 'smem constant byte address 0x4 - core index']
  #allocation1 [shape = 'u32[144,128]{1,0:T(1,128)}', space=vmem, size = 0x12000, scoped, tag = 'internal scratch']
  %s0 = inlined_call_operand.vmem [shape: bf16[2,512], index: 0, kind: input, shape index: {}]
  %s1 = inlined_call_operand.vmem [shape: bf16[2,16], index: 1, kind: input, shape index: {}]
  %s2 = inlined_call_operand.vmem [shape: bf16[512,56], index: 2, kind: input, shape index: {}]
  %s3 = inlined_call_operand.vmem [shape: bf16[16,56], index: 3, kind: input, shape index: {}]
  %s4 = inlined_call_operand.vmem [shape: f32[1,56], index: 4, kind: input, shape index: {}]
  %s5 = inlined_call_operand.vmem [shape: f32[4,8], index: 5, kind: input, shape index: {}]
  %s6 = inlined_call_operand.vmem [shape: f32[32,8], index: 6, kind: input, shape index: {}]
  %s7 = inlined_call_operand.vmem [shape: f32[2,8], index: 7, kind: output, shape index: {}]
  %s8 = sld [smem:[#allocation0]]
  $region38: #{fuse_ppnet_forward.1} parent=0
    _
  %s10 = ssub.s32 1, %s8
  %s11 = scalar_select 0, %s10, %s8
  // Predicated region
  $region2: #{fuse_ppnet_forward.1} parent=0 // pred_check
    _
  $region3: #{fuse_ppnet_forward.1} parent=0 // pred_check_branch
    %13 = sbr.rel (0) target = $region5
  $region4: #{fuse_ppnet_forward.1} parent=0 // pred_region
    _
  $region5: #{fuse_ppnet_forward.1} parent=0 // pred_fallthru
    _
  // Predicated region
  $region6: #{fuse_ppnet_forward.1} parent=0 // pred_check
    _
  $region7: #{fuse_ppnet_forward.1} parent=0 // pred_check_branch
    %15 = sbr.rel (0) target = $region9
  $region8: #{fuse_ppnet_forward.1} parent=0 // pred_region
    _
  $region9: #{fuse_ppnet_forward.1} parent=0 // pred_fallthru
    _
  // Predicated region
  $region10: #{fuse_ppnet_forward.1} parent=0 // pred_check
    _
  $region11: #{fuse_ppnet_forward.1} parent=0 // pred_check_branch
    %17 = sbr.rel (0) target = $region13
  $region12: #{fuse_ppnet_forward.1} parent=0 // pred_region
    _
  $region13: #{fuse_ppnet_forward.1} parent=0 // pred_fallthru
    _
  // Predicated region
  $region14: #{fuse_ppnet_forward.1} parent=0 // pred_check
    _
  $region15: #{fuse_ppnet_forward.1} parent=0 // pred_check_branch
    %19 = sbr.rel (0) target = $region17
  $region16: #{fuse_ppnet_forward.1} parent=0 // pred_region
    _
  $region17: #{fuse_ppnet_forward.1} parent=0 // pred_fallthru
    _
  // Predicated region
  $region18: #{fuse_ppnet_forward.1} parent=0 // pred_check
    _
  $region19: #{fuse_ppnet_forward.1} parent=0 // pred_check_branch
    %21 = sbr.rel (0) target = $region21
  $region20: #{fuse_ppnet_forward.1} parent=0 // pred_region
    _
  $region21: #{fuse_ppnet_forward.1} parent=0 // pred_fallthru
    _
  // Predicated region
  $region22: #{fuse_ppnet_forward.1} parent=0 // pred_check
    _
  $region23: #{fuse_ppnet_forward.1} parent=0 // pred_check_branch
    %23 = sbr.rel (0) target = $region25
  $region24: #{fuse_ppnet_forward.1} parent=0 // pred_region
    _
  $region25: #{fuse_ppnet_forward.1} parent=0 // pred_fallthru
    _
  // Predicated region
  $region26: #{fuse_ppnet_forward.1} parent=0 // pred_check
    _
  $region27: #{fuse_ppnet_forward.1} parent=0 // pred_check_branch
    %25 = sbr.rel (0) target = $region29
  $region28: #{fuse_ppnet_forward.1} parent=0 // pred_region
    _
  $region29: #{fuse_ppnet_forward.1} parent=0 // pred_fallthru
    _
  %v27 = vld [vmem:[%s0] sm:$0xf]
  %v28 = vld [vmem:[%s1] sm:$0x1]
  %v29 = vld [vmem:[%s2] sm:$0xf]
  %v30 = vld [vmem:[%s2 + $0x4] sm:$0xf]
  %v31 = vld [vmem:[%s2 + $0x8] sm:$0xf]
  %v32 = vld [vmem:[%s2 + $0xc] sm:$0xf]
  %v33 = vld [vmem:[%s2 + $0x10] sm:$0xf]
  %v34 = vld [vmem:[%s2 + $0x14] sm:$0xf]
  %v35 = vld [vmem:[%s2 + $0x18] sm:$0xf]
  %v36 = vld [vmem:[%s2 + $0x1c] sm:$0xf]
  %v37 = vld [vmem:[%s2 + $0x20] sm:$0xf]
  %v38 = vld [vmem:[%s2 + $0x24] sm:$0xf]
  %v39 = vld [vmem:[%s2 + $0x28] sm:$0xf]
  %v40 = vld [vmem:[%s2 + $0x2c] sm:$0xf]
  %v41 = vld [vmem:[%s2 + $0x30] sm:$0xf]
  %v42 = vld [vmem:[%s2 + $0x34] sm:$0xf]
  %v43 = vld [vmem:[%s2 + $0x38] sm:$0xf]
  %v44 = vld [vmem:[%s2 + $0x3c] sm:$0xf]
  %v45 = vld [vmem:[%s2 + $0x40] sm:$0xf]
  %v46 = vld [vmem:[%s2 + $0x44] sm:$0xf]
  %v47 = vld [vmem:[%s2 + $0x48] sm:$0xf]
  %v48 = vld [vmem:[%s2 + $0x4c] sm:$0xf]
  %v49 = vld [vmem:[%s2 + $0x50] sm:$0xf]
  %v50 = vld [vmem:[%s2 + $0x54] sm:$0xf]
  %v51 = vld [vmem:[%s2 + $0x58] sm:$0xf]
  %v52 = vld [vmem:[%s2 + $0x5c] sm:$0xf]
  %v53 = vld [vmem:[%s2 + $0x60] sm:$0xf]
  %v54 = vld [vmem:[%s2 + $0x64] sm:$0xf]
  %v55 = vld [vmem:[%s2 + $0x68] sm:$0xf]
  %v56 = vld [vmem:[%s2 + $0x6c] sm:$0xf]
  %v57 = vld [vmem:[%s2 + $0x70] sm:$0xf]
  %v58 = vld [vmem:[%s2 + $0x74] sm:$0xf]
  %v59 = vld [vmem:[%s2 + $0x78] sm:$0xf]
  %v60 = vld [vmem:[%s2 + $0x7c] sm:$0xf]
  %v61 = vld [vmem:[%s2 + $0x80] sm:$0xf]
  %v62 = vld [vmem:[%s2 + $0x84] sm:$0xf]
  %v63 = vld [vmem:[%s2 + $0x88] sm:$0xf]
  %v64 = vld [vmem:[%s2 + $0x8c] sm:$0xf]
  %v65 = vld [vmem:[%s2 + $0x90] sm:$0xf]
  %v66 = vld [vmem:[%s2 + $0x94] sm:$0xf]
  %v67 = vld [vmem:[%s2 + $0x98] sm:$0xf]
  %v68 = vld [vmem:[%s2 + $0x9c] sm:$0xf]
  %v69 = vld [vmem:[%s2 + $0xa0] sm:$0xf]
  %v70 = vld [vmem:[%s2 + $0xa4] sm:$0xf]
  %v71 = vld [vmem:[%s2 + $0xa8] sm:$0xf]
  %v72 = vld [vmem:[%s2 + $0xac] sm:$0xf]
  %v73 = vld [vmem:[%s2 + $0xb0] sm:$0xf]
  %v74 = vld [vmem:[%s2 + $0xb4] sm:$0xf]
  %v75 = vld [vmem:[%s2 + $0xb8] sm:$0xf]
  %v76 = vld [vmem:[%s2 + $0xbc] sm:$0xf]
  %v77 = vld [vmem:[%s2 + $0xc0] sm:$0xf]
  %v78 = vld [vmem:[%s2 + $0xc4] sm:$0xf]
  %v79 = vld [vmem:[%s2 + $0xc8] sm:$0xf]
  %v80 = vld [vmem:[%s2 + $0xcc] sm:$0xf]
  %v81 = vld [vmem:[%s2 + $0xd0] sm:$0xf]
  %v82 = vld [vmem:[%s2 + $0xd4] sm:$0xf]
  %v83 = vld [vmem:[%s2 + $0xd8] sm:$0xf]
  %v84 = vld [vmem:[%s2 + $0xdc] sm:$0xf]
  %v85 = vld [vmem:[%s2 + $0xe0] sm:$0xf]
  %v86 = vld [vmem:[%s2 + $0xe4] sm:$0xf]
  %v87 = vld [vmem:[%s2 + $0xe8] sm:$0xf]
  %v88 = vld [vmem:[%s2 + $0xec] sm:$0xf]
  %v89 = vld [vmem:[%s2 + $0xf0] sm:$0xf]
  %v90 = vld [vmem:[%s2 + $0xf4] sm:$0xf]
  %v91 = vld [vmem:[%s2 + $0xf8] sm:$0xf]
  %v92 = vld [vmem:[%s2 + $0xfc] sm:$0xf]
  %v93 = vld [vmem:[%s3] sm:$0xf]
  %v94 = vld [vmem:[%s3 + $0x4] sm:$0xf]
  %v97 = vunpack.c.l.b16 %v93
  %v98 = vunpack.c.l.b16 %v94
  %v99 = vpack.c.b16 %v98, %v97
  %vm101 = vcmask 130048
  %v103 = vsel %vm101, %v28, 0
  %105 = vmatprep.subr.bf16.mxu0 0
  %106 = vmatpush1.bf16.msra.mxu0 %v99
  %107 = vmatprep.subr.bf16.mxu0 0
  %108 = vmatpush1.bf16.msra.mxu0 0
  %109 = vmatprep.subr.bf16.mxu0 0
  %110 = vmatpush1.bf16.msra.mxu0 0
  %111 = vmatprep.subr.bf16.mxu0 0
  %112 = vmatpush1.bf16.msra.mxu0 0
  %113 = vmatprep.subr.bf16.mxu0 0
  %114 = vmatpush1.bf16.msra.mxu0 0
  %115 = vmatprep.subr.bf16.mxu0 0
  %116 = vmatpush1.bf16.msra.mxu0 0
  %117 = vmatprep.subr.bf16.mxu0 0
  %118 = vmatpush1.bf16.msra.mxu0 0
  %119 = vmatprep.subr.bf16.mxu0 0
  %120 = vmatpush1.bf16.msra.mxu0 0
  %121 = vmatprep.subr.bf16.mxu0 0
  %122 = vmatpush1.bf16.msra.mxu0 0
  %123 = vmatprep.subr.bf16.mxu0 0
  %124 = vmatpush1.bf16.msra.mxu0 0
  %125 = vmatprep.subr.bf16.mxu0 0
  %126 = vmatpush1.bf16.msra.mxu0 0
  %127 = vmatprep.subr.bf16.mxu0 0
  %128 = vmatpush1.bf16.msra.mxu0 0
  %129 = vmatprep.subr.bf16.mxu0 0
  %130 = vmatpush1.bf16.msra.mxu0 0
  %131 = vmatprep.subr.bf16.mxu0 0
  %132 = vmatpush1.bf16.msra.mxu0 0
  %133 = vmatprep.subr.bf16.mxu0 0
  %134 = vmatpush1.bf16.msra.mxu0 0
  %135 = vmatprep.subr.bf16.mxu0 0
  %136 = vmatpush1.bf16.msra.mxu0 0
  %137 = vmatprep.mubr.bf16.mxu0 0
  %138 = vmatmul.mubr.bf16.gmra.mrb[0].mxu0 %v103
  %v139 = vpop.f32.mrb[0].mxu0
  %v140 = vadd.f32 0.0, %v139
  %v141 = vpop.f32.mrb[0].mxu0
  %v142 = vpop.f32.mrb[0].mxu0
  %v143 = vpop.f32.mrb[0].mxu0
  %144 = vdwg.mxu0
  %v147 = vunpack.c.l.s4 1966171168
  %v148 = vunpack.c.0.s8 %v147
  %v149 = vlaneseq
  %v150 = vshrl.u32 %v149, 7
  %v151 = vsub.s32 %v148, %v150
  %v152 = vrot.slane %v27, %v151
  %v153 = vcombine.high %v152, %v152
  %v155 = vunpack.c.l.s4 1966171168
  %v156 = vunpack.c.0.s8 %v155
  %v157 = vlaneseq
  %v158 = vshrl.u32 %v157, 7
  %v159 = vsub.s32 %v156, %v158
  %v160 = vrot.slane %v152, %v159
  %v162 = vunpack.c.l.s4 1966171168
  %v163 = vunpack.c.0.s8 %v162
  %v164 = vlaneseq
  %v165 = vshrl.u32 %v164, 7
  %v166 = vsub.s32 %v163, %v165
  %v167 = vrot.slane %v153, %v166
  %v168 = vcombine.high %v160, %v160
  %v169 = vcombine.high %v167, %v167
  %v238 = vunpack.c.l.b16 %v29
  %v239 = vunpack.c.l.b16 %v30
  %v240 = vunpack.c.l.b16 %v31
  %v241 = vunpack.c.l.b16 %v32
  %v242 = vunpack.c.l.b16 %v33
  %v243 = vunpack.c.l.b16 %v34
  %v244 = vunpack.c.l.b16 %v35
  %v245 = vunpack.c.l.b16 %v36
  %v246 = vunpack.c.l.b16 %v37
  %v247 = vunpack.c.l.b16 %v38
  %v248 = vunpack.c.l.b16 %v39
  %v249 = vunpack.c.l.b16 %v40
  %v250 = vunpack.c.l.b16 %v41
  %v251 = vunpack.c.l.b16 %v42
  %v252 = vunpack.c.l.b16 %v43
  %v253 = vunpack.c.l.b16 %v44
  %v254 = vunpack.c.l.b16 %v45
  %v255 = vunpack.c.l.b16 %v46
  %v256 = vunpack.c.l.b16 %v47
  %v257 = vunpack.c.l.b16 %v48
  %v258 = vunpack.c.l.b16 %v49
  %v259 = vunpack.c.l.b16 %v50
  %v260 = vunpack.c.l.b16 %v51
  %v261 = vunpack.c.l.b16 %v52
  %v262 = vunpack.c.l.b16 %v53
  %v263 = vunpack.c.l.b16 %v54
  %v264 = vunpack.c.l.b16 %v55
  %v265 = vunpack.c.l.b16 %v56
  %v266 = vunpack.c.l.b16 %v57
  %v267 = vunpack.c.l.b16 %v58
  %v268 = vunpack.c.l.b16 %v59
  %v269 = vunpack.c.l.b16 %v60
  %v270 = vunpack.c.l.b16 %v61
  %v271 = vunpack.c.l.b16 %v62
  %v272 = vunpack.c.l.b16 %v63
  %v273 = vunpack.c.l.b16 %v64
  %v274 = vunpack.c.l.b16 %v65
  %v275 = vunpack.c.l.b16 %v66
  %v276 = vunpack.c.l.b16 %v67
  %v277 = vunpack.c.l.b16 %v68
  %v278 = vunpack.c.l.b16 %v69
  %v279 = vunpack.c.l.b16 %v70
  %v280 = vunpack.c.l.b16 %v71
  %v281 = vunpack.c.l.b16 %v72
  %v282 = vunpack.c.l.b16 %v73
  %v283 = vunpack.c.l.b16 %v74
  %v284 = vunpack.c.l.b16 %v75
  %v285 = vunpack.c.l.b16 %v76
  %v286 = vunpack.c.l.b16 %v77
  %v287 = vunpack.c.l.b16 %v78
  %v288 = vunpack.c.l.b16 %v79
  %v289 = vunpack.c.l.b16 %v80
  %v290 = vunpack.c.l.b16 %v81
  %v291 = vunpack.c.l.b16 %v82
  %v292 = vunpack.c.l.b16 %v83
  %v293 = vunpack.c.l.b16 %v84
  %v294 = vunpack.c.l.b16 %v85
  %v295 = vunpack.c.l.b16 %v86
  %v296 = vunpack.c.l.b16 %v87
  %v297 = vunpack.c.l.b16 %v88
  %v298 = vunpack.c.l.b16 %v89
  %v299 = vunpack.c.l.b16 %v90
  %v300 = vunpack.c.l.b16 %v91
  %v301 = vunpack.c.l.b16 %v92
  %v302 = vpack.c.b16 %v239, %v238
  %v303 = vpack.c.b16 %v241, %v240
  %v304 = vpack.c.b16 %v243, %v242
  %v305 = vpack.c.b16 %v245, %v244
  %v306 = vpack.c.b16 %v247, %v246
  %v307 = vpack.c.b16 %v249, %v248
  %v308 = vpack.c.b16 %v251, %v250
  %v309 = vpack.c.b16 %v253, %v252
  %v310 = vpack.c.b16 %v255, %v254
  %v311 = vpack.c.b16 %v257, %v256
  %v312 = vpack.c.b16 %v259, %v258
  %v313 = vpack.c.b16 %v261, %v260
  %v314 = vpack.c.b16 %v263, %v262
  %v315 = vpack.c.b16 %v265, %v264
  %v316 = vpack.c.b16 %v267, %v266
  %v317 = vpack.c.b16 %v269, %v268
  %v318 = vpack.c.b16 %v271, %v270
  %v319 = vpack.c.b16 %v273, %v272
  %v320 = vpack.c.b16 %v275, %v274
  %v321 = vpack.c.b16 %v277, %v276
  %v322 = vpack.c.b16 %v279, %v278
  %v323 = vpack.c.b16 %v281, %v280
  %v324 = vpack.c.b16 %v283, %v282
  %v325 = vpack.c.b16 %v285, %v284
  %v326 = vpack.c.b16 %v287, %v286
  %v327 = vpack.c.b16 %v289, %v288
  %v328 = vpack.c.b16 %v291, %v290
  %v329 = vpack.c.b16 %v293, %v292
  %v330 = vpack.c.b16 %v295, %v294
  %v331 = vpack.c.b16 %v297, %v296
  %v332 = vpack.c.b16 %v299, %v298
  %v333 = vpack.c.b16 %v301, %v300
  %366 = vmatprep.subr.bf16.mxu0 0
  %367 = vmatpush1.bf16.msra.mxu0 %v302
  %368 = vmatprep.subr.bf16.mxu0 0
  %369 = vmatpush1.bf16.msra.mxu0 %v303
  %370 = vmatprep.subr.bf16.mxu0 0
  %371 = vmatpush1.bf16.msra.mxu0 %v304
  %372 = vmatprep.subr.bf16.mxu0 0
  %373 = vmatpush1.bf16.msra.mxu0 %v305
  %374 = vmatprep.subr.bf16.mxu0 0
  %375 = vmatpush1.bf16.msra.mxu0 %v306
  %376 = vmatprep.subr.bf16.mxu0 0
  %377 = vmatpush1.bf16.msra.mxu0 %v307
  %378 = vmatprep.subr.bf16.mxu0 0
  %379 = vmatpush1.bf16.msra.mxu0 %v308
  %380 = vmatprep.subr.bf16.mxu0 0
  %381 = vmatpush1.bf16.msra.mxu0 %v309
  %382 = vmatprep.subr.bf16.mxu0 0
  %383 = vmatpush1.bf16.msra.mxu0 %v310
  %384 = vmatprep.subr.bf16.mxu0 0
  %385 = vmatpush1.bf16.msra.mxu0 %v311
  %386 = vmatprep.subr.bf16.mxu0 0
  %387 = vmatpush1.bf16.msra.mxu0 %v312
  %388 = vmatprep.subr.bf16.mxu0 0
  %389 = vmatpush1.bf16.msra.mxu0 %v313
  %390 = vmatprep.subr.bf16.mxu0 0
  %391 = vmatpush1.bf16.msra.mxu0 %v314
  %392 = vmatprep.subr.bf16.mxu0 0
  %393 = vmatpush1.bf16.msra.mxu0 %v315
  %394 = vmatprep.subr.bf16.mxu0 0
  %395 = vmatpush1.bf16.msra.mxu0 %v316
  %396 = vmatprep.subr.bf16.mxu0 0
  %397 = vmatpush1.bf16.msra.mxu0 %v317
  %398 = vmatprep.mubr.bf16.mxu0 %v167
  %399 = vmatmul.mubr.bf16.gmra.mrb[0].mxu0 %v160
  %v400 = vpop.f32.mrb[0].mxu0
  %v401 = vadd.f32 %v140, %v400
  %v402 = vpop.f32.mrb[0].mxu0
  %v403 = vpop.f32.mrb[0].mxu0
  %v404 = vpop.f32.mrb[0].mxu0
  %405 = vdwg.mxu0
  %406 = vmatprep.subr.bf16.mxu0 0
  %407 = vmatpush1.bf16.msra.mxu0 %v318
  %408 = vmatprep.subr.bf16.mxu0 0
  %409 = vmatpush1.bf16.msra.mxu0 %v319
  %410 = vmatprep.subr.bf16.mxu0 0
  %411 = vmatpush1.bf16.msra.mxu0 %v320
  %412 = vmatprep.subr.bf16.mxu0 0
  %413 = vmatpush1.bf16.msra.mxu0 %v321
  %414 = vmatprep.subr.bf16.mxu0 0
  %415 = vmatpush1.bf16.msra.mxu0 %v322
  %416 = vmatprep.subr.bf16.mxu0 0
  %417 = vmatpush1.bf16.msra.mxu0 %v323
  %418 = vmatprep.subr.bf16.mxu0 0
  %419 = vmatpush1.bf16.msra.mxu0 %v324
  %420 = vmatprep.subr.bf16.mxu0 0
  %421 = vmatpush1.bf16.msra.mxu0 %v325
  %422 = vmatprep.subr.bf16.mxu0 0
  %423 = vmatpush1.bf16.msra.mxu0 %v326
  %424 = vmatprep.subr.bf16.mxu0 0
  %425 = vmatpush1.bf16.msra.mxu0 %v327
  %426 = vmatprep.subr.bf16.mxu0 0
  %427 = vmatpush1.bf16.msra.mxu0 %v328
  %428 = vmatprep.subr.bf16.mxu0 0
  %429 = vmatpush1.bf16.msra.mxu0 %v329
  %430 = vmatprep.subr.bf16.mxu0 0
  %431 = vmatpush1.bf16.msra.mxu0 %v330
  %432 = vmatprep.subr.bf16.mxu0 0
  %433 = vmatpush1.bf16.msra.mxu0 %v331
  %434 = vmatprep.subr.bf16.mxu0 0
  %435 = vmatpush1.bf16.msra.mxu0 %v332
  %436 = vmatprep.subr.bf16.mxu0 0
  %437 = vmatpush1.bf16.msra.mxu0 %v333
  %438 = vmatprep.mubr.bf16.mxu0 %v169
  %439 = vmatmul.mubr.bf16.gmra.mrb[0].mxu0 %v168
  %v440 = vpop.f32.mrb[0].mxu0
  %v441 = vadd.f32 %v401, %v440
  %v442 = vpop.f32.mrb[0].mxu0
  %v443 = vpop.f32.mrb[0].mxu0
  %v444 = vpop.f32.mrb[0].mxu0
  %445 = vdwg.mxu0
  %v446 = vld [vmem:[%s4] sm:$0x1]
  %v448 = vlaneseq
  %v449 = vshrl.u32 %v448, 7
  %v450 = vsub.s32 0, %v449
  %v451 = vrot.slane %v446, %v450
  %v453 = vadd.f32 %v441, %v451
  %vm454 = vcmask 255104
  %v455 = vsel %vm454, %v453, -inf
  %456 = vmax.xlane.f32.xlu0 %v455
  %v457 = vpop.xlane.xlu0 %456
  %v458 = vsel %vm454, %v453, inf
  %459 = vmin.xlane.f32.xlu0 %v458
  %v460 = vpop.xlane.xlu0 %459
  %v461 = vmul.f32 %v453, %v457
  %v462 = vmul.f32 %v453, %v460
  %v463 = vmax.f32 %v461, %v462
  %465 = vrot.lane.b32.xlu0 %v453, 16
  %v466 = vpop.permute.xlu0 %465
  %v468 = vmul.f32 %v453, %v466
  %v469 = vsub.f32 %v468, %v463
  %v470 = vmul.f32 %v469, 1.442695
  %v471 = vpow.pop %v470
  %472 = vrot.lane.b32.xlu0 %v453, 32
  %v473 = vpop.permute.xlu0 %472
  %v475 = vmul.f32 %v471, %v473
  %477 = vrot.lane.b32.xlu0 %v471, 96
  %v478 = vpop.permute.xlu0 %477
  %481 = vrot.lane.b32.xlu0 %v475, 112
  %v482 = vpop.permute.xlu0 %481
  %v484 = vsel %vm101, %v478, %v482
  %v485 = vld [vmem:[%s6] sm:$0xff]
  %v486 = vld [vmem:[%s6 + $0x8] sm:$0xff]
  %v487 = vld [vmem:[%s6 + $0x10] sm:$0xff]
  %v488 = vld [vmem:[%s6 + $0x18] sm:$0xff]
  %vm489 = vcmask 261120
  %v491 = vsel %vm489, %v484, 0
  %493 = vmatprep.subr.mxu0 0.0
  %494 = vmatpush1.msra.mxu0 %v485
  %495 = vmatprep.subr.mxu0 0.0
  %496 = vmatpush1.msra.mxu0 %v486
  %497 = vmatprep.subr.mxu0 0.0
  %498 = vmatpush1.msra.mxu0 %v487
  %499 = vmatprep.subr.mxu0 0.0
  %500 = vmatpush1.msra.mxu0 %v488
  %501 = vmatprep.subr.mxu0 0.0
  %502 = vmatpush1.msra.mxu0 0.0
  %503 = vmatprep.subr.mxu0 0.0
  %504 = vmatpush1.msra.mxu0 0.0
  %505 = vmatprep.subr.mxu0 0.0
  %506 = vmatpush1.msra.mxu0 0.0
  %507 = vmatprep.subr.mxu0 0.0
  %508 = vmatpush1.msra.mxu0 0.0
  %509 = vmatprep.subr.mxu0 0.0
  %510 = vmatpush1.msra.mxu0 0.0
  %511 = vmatprep.subr.mxu0 0.0
  %512 = vmatpush1.msra.mxu0 0.0
  %513 = vmatprep.subr.mxu0 0.0
  %514 = vmatpush1.msra.mxu0 0.0
  %515 = vmatprep.subr.mxu0 0.0
  %516 = vmatpush1.msra.mxu0 0.0
  %517 = vmatprep.subr.mxu0 0.0
  %518 = vmatpush1.msra.mxu0 0.0
  %519 = vmatprep.subr.mxu0 0.0
  %520 = vmatpush1.msra.mxu0 0.0
  %521 = vmatprep.subr.mxu0 0.0
  %522 = vmatpush1.msra.mxu0 0.0
  %523 = vmatprep.subr.mxu0 0.0
  %524 = vmatpush1.msra.mxu0 0.0
  %525 = vmatprep.subr.mxu0 0.0
  %526 = vmatpush1.msra.mxu0 0.0
  %527 = vmatprep.subr.mxu0 0.0
  %528 = vmatpush1.msra.mxu0 0.0
  %529 = vmatprep.subr.mxu0 0.0
  %530 = vmatpush1.msra.mxu0 0.0
  %531 = vmatprep.subr.mxu0 0.0
  %532 = vmatpush1.msra.mxu0 0.0
  %533 = vmatprep.subr.mxu0 0.0
  %534 = vmatpush1.msra.mxu0 0.0
  %535 = vmatprep.subr.mxu0 0.0
  %536 = vmatpush1.msra.mxu0 0.0
  %537 = vmatprep.subr.mxu0 0.0
  %538 = vmatpush1.msra.mxu0 0.0
  %539 = vmatprep.subr.mxu0 0.0
  %540 = vmatpush1.msra.mxu0 0.0
  %541 = vmatprep.subr.mxu0 0.0
  %542 = vmatpush1.msra.mxu0 0.0
  %543 = vmatprep.subr.mxu0 0.0
  %544 = vmatpush1.msra.mxu0 0.0
  %545 = vmatprep.subr.mxu0 0.0
  %546 = vmatpush1.msra.mxu0 0.0
  %547 = vmatprep.subr.mxu0 0.0
  %548 = vmatpush1.msra.mxu0 0.0
  %549 = vmatprep.subr.mxu0 0.0
  %550 = vmatpush1.msra.mxu0 0.0
  %551 = vmatprep.subr.mxu0 0.0
  %552 = vmatpush1.msra.mxu0 0.0
  %553 = vmatprep.subr.mxu0 0.0
  %554 = vmatpush1.msra.mxu0 0.0
  %555 = vmatprep.subr.mxu0 0.0
  %556 = vmatpush1.msra.mxu0 0.0
  %557 = vmatprep.mubr.f32.mxu0 0.0
  %558 = vmatmul.mubr.f32.gmra.mrb[0].mxu0 %v491
  %v559 = vpop.f32.mrb[0].mxu0
  %v560 = vadd.f32 0.0, %v559
  %v561 = vpop.f32.mrb[0].mxu0
  %562 = vdwg.mxu0
  %v563 = vrcp.pop %v560
  %565 = vrot.lane.b32.xlu0 %v563, 4
  %v566 = vpop.permute.xlu0 %565
  %v568 = vmul.f32 %v560, %v566
  %v569 = vld [vmem:[%s5] sm:$0xf]
  %571 = vrot.lane.b32.xlu0 %v568, 124
  %v572 = vpop.permute.xlu0 %571
  %vm573 = vcmask 31744
  %v574 = vsel %vm573, %v572, 0
  %vm576 = vcmask 1043456
  %v578 = vsel %vm576, %v569, 0
  %580 = vmatprep.subr.mxu0 0.0
  %581 = vmatpush1.msra.mxu0 %v578
  %582 = vmatprep.subr.mxu0 0.0
  %583 = vmatpush1.msra.mxu0 0.0
  %584 = vmatprep.subr.mxu0 0.0
  %585 = vmatpush1.msra.mxu0 0.0
  %586 = vmatprep.subr.mxu0 0.0
  %587 = vmatpush1.msra.mxu0 0.0
  %588 = vmatprep.subr.mxu0 0.0
  %589 = vmatpush1.msra.mxu0 0.0
  %590 = vmatprep.subr.mxu0 0.0
  %591 = vmatpush1.msra.mxu0 0.0
  %592 = vmatprep.subr.mxu0 0.0
  %593 = vmatpush1.msra.mxu0 0.0
  %594 = vmatprep.subr.mxu0 0.0
  %595 = vmatpush1.msra.mxu0 0.0
  %596 = vmatprep.subr.mxu0 0.0
  %597 = vmatpush1.msra.mxu0 0.0
  %598 = vmatprep.subr.mxu0 0.0
  %599 = vmatpush1.msra.mxu0 0.0
  %600 = vmatprep.subr.mxu0 0.0
  %601 = vmatpush1.msra.mxu0 0.0
  %602 = vmatprep.subr.mxu0 0.0
  %603 = vmatpush1.msra.mxu0 0.0
  %604 = vmatprep.subr.mxu0 0.0
  %605 = vmatpush1.msra.mxu0 0.0
  %606 = vmatprep.subr.mxu0 0.0
  %607 = vmatpush1.msra.mxu0 0.0
  %608 = vmatprep.subr.mxu0 0.0
  %609 = vmatpush1.msra.mxu0 0.0
  %610 = vmatprep.subr.mxu0 0.0
  %611 = vmatpush1.msra.mxu0 0.0
  %612 = vmatprep.subr.mxu0 0.0
  %613 = vmatpush1.msra.mxu0 0.0
  %614 = vmatprep.subr.mxu0 0.0
  %615 = vmatpush1.msra.mxu0 0.0
  %616 = vmatprep.subr.mxu0 0.0
  %617 = vmatpush1.msra.mxu0 0.0
  %618 = vmatprep.subr.mxu0 0.0
  %619 = vmatpush1.msra.mxu0 0.0
  %620 = vmatprep.subr.mxu0 0.0
  %621 = vmatpush1.msra.mxu0 0.0
  %622 = vmatprep.subr.mxu0 0.0
  %623 = vmatpush1.msra.mxu0 0.0
  %624 = vmatprep.subr.mxu0 0.0
  %625 = vmatpush1.msra.mxu0 0.0
  %626 = vmatprep.subr.mxu0 0.0
  %627 = vmatpush1.msra.mxu0 0.0
  %628 = vmatprep.subr.mxu0 0.0
  %629 = vmatpush1.msra.mxu0 0.0
  %630 = vmatprep.subr.mxu0 0.0
  %631 = vmatpush1.msra.mxu0 0.0
  %632 = vmatprep.subr.mxu0 0.0
  %633 = vmatpush1.msra.mxu0 0.0
  %634 = vmatprep.subr.mxu0 0.0
  %635 = vmatpush1.msra.mxu0 0.0
  %636 = vmatprep.subr.mxu0 0.0
  %637 = vmatpush1.msra.mxu0 0.0
  %638 = vmatprep.subr.mxu0 0.0
  %639 = vmatpush1.msra.mxu0 0.0
  %640 = vmatprep.subr.mxu0 0.0
  %641 = vmatpush1.msra.mxu0 0.0
  %642 = vmatprep.subr.mxu0 0.0
  %643 = vmatpush1.msra.mxu0 0.0
  %644 = vmatprep.mubr.f32.mxu0 0.0
  %645 = vmatmul.mubr.f32.gmra.mrb[0].mxu0 %v574
  %v646 = vpop.f32.mrb[0].mxu0
  %v647 = vadd.f32 0.0, %v646
  %v648 = vpop.f32.mrb[0].mxu0
  %649 = vdwg.mxu0
  %651 = vrot.lane.b32.xlu0 %v647, 48
  %v652 = vpop.permute.xlu0 %651
  %v654 = vadd.f32 %v453, %v652
  %656 = vrot.lane.b32.xlu0 %v654, 80
  %v657 = vpop.permute.xlu0 %656
  %vm659 = vcmask 58368
  %660 = vst.msk [vmem:[%s7] sm:$0x3] %vm659, %v657
  // Predicated region
  $region30: #{fuse_ppnet_forward.1} parent=0 // pred_check
    _
  $region31: #{fuse_ppnet_forward.1} parent=0 // pred_check_branch
    %662 = sbr.rel (0) target = $region33
  $region32: #{fuse_ppnet_forward.1} parent=0 // pred_region
    _
  $region33: #{fuse_ppnet_forward.1} parent=0 // pred_fallthru
    _
  // Predicated region
  $region34: #{fuse_ppnet_forward.1} parent=0 // pred_check
    _
  $region35: #{fuse_ppnet_forward.1} parent=0 // pred_check_branch
    %664 = sbr.rel (0) target = $region37
  $region36: #{fuse_ppnet_forward.1} parent=0 // pred_region
    _
  $region37: #{fuse_ppnet_forward.1} parent=0 // pred_fallthru
    _

</llo_original>
